<compile_context>
chip_gen: v5e
topology: v5e:2x2
jax: 0.10.0
libtpu: 0.0.40
codegen_flags: <defaults>
</compile_context>

<pallas_src>
import functools
import math

import jax
import jax.numpy as jnp
import numpy as np
from jax import lax
from jax.experimental import pallas as pl
from jax.experimental.pallas import tpu as pltpu

HPAD = 128      # hidden 64 padded to 128 lanes (native MXU tile, unmasked vreg ops)
VPAD = 128      # vocab 32 padded to 128 lanes (lane-dense logits & output stores)
NEG_BIG = -1e30  # padded output-bias entries: exp(NEG_BIG - m) == 0.0 exactly


def rnnlm_kernel(tok_ref, c_ref, wi_ref, b_ref, wh_ref, wo_ref, bo_ref,
                 out_ref, work_ref, *, seq_len, batch):
    """Whole forward pass in one gridless kernel invocation.

    tok_ref : (T*B, 1)      int32 tokens, time-major rows (row t*B + b == token[t, b])
    c_ref   : (VPAD, E)     zero-padded embedding table
    wi_ref  : (E, HPAD)     input-to-hidden weight (cols >= H are zero)
    b_ref   : (1, HPAD)     folded bias bi + bh (cols >= H are zero)
    wh_ref  : (HPAD, HPAD)  hidden-to-hidden weight (padded rows/cols zero)
    wo_ref  : (HPAD, VPAD)  output weight (rows >= H and cols >= V are zero)
    bo_ref  : (1, VPAD)     output bias, padded entries == NEG_BIG
    out_ref : (T*B, VPAD)   log-softmax output (real columns [:V] sliced by the wrapper)
    work_ref: (T*B, HPAD)   VMEM scratch: first pre_x, overwritten in place with the h_t's
    """
    tb = out_ref.shape[0]
    vpad = c_ref.shape[0]
    hpad = wh_ref.shape[0]

    # ---- Fused embedding lookup: onehot(tokens) @ C_pad == C[tokens] exactly (MXU).
    tok = tok_ref[...]                                            # (T*B, 1) int32
    ids = lax.broadcasted_iota(jnp.int32, (tb, vpad), 1)
    onehot = (tok == ids).astype(jnp.float32)                     # (T*B, VPAD)
    x = jnp.dot(onehot, c_ref[...], preferred_element_type=jnp.float32)   # (T*B, E)

    # ---- Time-parallel prologue: pre_x = x @ Wi + (bi + bh) for ALL steps in one MXU call.
    work_ref[...] = (jnp.dot(x, wi_ref[...], preferred_element_type=jnp.float32)
                     + b_ref[...])

    # ---- Serial recurrence (the only inherently sequential part), fully unrolled:
    #      h_t = tanh(pre_x[t] + h_{t-1} @ Wh).  Padded columns stay exactly zero.
    wh = wh_ref[...]                                              # loop-invariant RHS, hoisted
    h = jnp.zeros((batch, hpad), jnp.float32)                     # h_0 = 0, like the PyTorch RNN
    for t in range(seq_len):
        rows = pl.ds(t * batch, batch)                            # static, sublane-aligned
        h = jnp.tanh(work_ref[rows, :]
                     + jnp.dot(h, wh, preferred_element_type=jnp.float32))
        work_ref[rows, :] = h                                     # pre_x[t] no longer needed

    # ---- Time-parallel epilogue: output projection + log-softmax at lane-dense width VPAD.
    #      Padded logits == NEG_BIG -> exp == 0, so real columns are unchanged.
    logits = (jnp.dot(work_ref[...], wo_ref[...], preferred_element_type=jnp.float32)
              + bo_ref[...])                                      # (T*B, VPAD)
    shifted = logits - jnp.max(logits, axis=-1, keepdims=True)
    out_ref[...] = shifted - jnp.log(jnp.sum(jnp.exp(shifted), axis=-1, keepdims=True))


def pack_params(params):
    """One-time parameter prep: fold bi+bh, zero-pad H->HPAD and V->VPAD (bo pads to NEG_BIG)."""
    C, wi, bi, wh, bh, wo, bo = params
    V, E = C.shape
    H = wi.shape[1]
    C_p = jnp.zeros((VPAD, E), jnp.float32).at[:V, :].set(C)
    wi_p = jnp.zeros((E, HPAD), jnp.float32).at[:, :H].set(wi)
    b_p = jnp.zeros((1, HPAD), jnp.float32).at[0, :H].set(bi + bh)
    wh_p = jnp.zeros((HPAD, HPAD), jnp.float32).at[:H, :H].set(wh)
    wo_p = jnp.zeros((HPAD, VPAD), jnp.float32).at[:H, :V].set(wo)
    bo_p = jnp.full((1, VPAD), NEG_BIG, jnp.float32).at[0, :V].set(bo)
    return (C_p, wi_p, b_p, wh_p, wo_p, bo_p)


@functools.partial(jax.jit, static_argnames=("vocab_size",))
def rnnlm_forward(tokens, packed, vocab_size):
    """tokens: (T, B) int32. Returns (T, B, V) float32 log-probabilities."""
    C_p, wi_p, b_p, wh_p, wo_p, bo_p = packed
    T, B = tokens.shape
    hpad = wh_p.shape[0]
    vpad = wo_p.shape[1]

    tok2 = tokens.reshape(T * B, 1).astype(jnp.int32)             # time-major rows

    vmem = pltpu.MemorySpace.VMEM
    out_pad = pl.pallas_call(
        functools.partial(rnnlm_kernel, seq_len=T, batch=B),
        out_shape=jax.ShapeDtypeStruct((T * B, vpad), jnp.float32),
        in_specs=[pl.BlockSpec(memory_space=vmem)] * 7,
        out_specs=pl.BlockSpec(memory_space=vmem),
        scratch_shapes=[pltpu.VMEM((T * B, hpad), jnp.float32)],
    )(tok2, C_p, wi_p, b_p, wh_p, wo_p, bo_p)

    return out_pad[:, :vocab_size].reshape(T, B, vocab_size)


def init_params(key, vocab_size, embedding_size=128, hidden_size=64):
    """Deterministic init matching the PyTorch module's uniform(-stdv, stdv) scheme."""
    k = jax.random.split(key, 7)

    def uni(k, shape, fan_in):
        stdv = 1.0 / math.sqrt(fan_in)
        return jax.random.uniform(k, shape, jnp.float32, minval=-stdv, maxval=stdv)

    C = uni(k[0], (vocab_size, embedding_size), vocab_size)          # Embedding.C
    wi = uni(k[1], (embedding_size, hidden_size), embedding_size)    # RNN.i2h.w
    bi = uni(k[2], (hidden_size,), embedding_size)                   # RNN.i2h.b
    wh = uni(k[3], (hidden_size, hidden_size), hidden_size)          # RNN.h2h.w
    bh = uni(k[4], (hidden_size,), hidden_size)                      # RNN.h2h.b
    wo = uni(k[5], (hidden_size, vocab_size), hidden_size)           # output Linear.w
    bo = uni(k[6], (vocab_size,), hidden_size)                       # output Linear.b
    return (C, wi, bi, wh, bh, wo, bo)


def ref_forward(tokens, params):
    """Pure-JAX reference of the same forward pass (eval-mode dropout), torch-style formulas."""
    C, wi, bi, wh, bh, wo, bo = params
    x = C[tokens]                                                    # (T, B, E)

    def step(h, xt):
        h = jnp.tanh(xt @ wi + bi + h @ wh + bh)
        return h, h

    h0 = jnp.zeros((tokens.shape[1], wi.shape[1]), jnp.float32)
    _, hs = jax.lax.scan(step, h0, x)                                # (T, B, H)
    logits = hs @ wo + bo                                            # (T, B, V)
    m = jnp.max(logits, axis=2, keepdims=True)
    X = jnp.exp(logits - m)
    return jnp.log(X) - jnp.log(jnp.sum(X, axis=2, keepdims=True))


if __name__ == "__main__":
    # Small shapes consistent with the module: vocab=32, embedding=128, hidden=64.
    vocab_size = 32
    seq_len = 8
    batch = 8

    key = jax.random.PRNGKey(0)
    k_params, k_tok = jax.random.split(key)
    params = init_params(k_params, vocab_size)
    packed = pack_params(params)                                     # one-time param prep

    tokens = jax.random.randint(k_tok, (seq_len, batch), 0, vocab_size, dtype=jnp.int32)

    out = rnnlm_forward(tokens, packed, vocab_size)
    out = jax.block_until_ready(out)

    ref = jax.block_until_ready(ref_forward(tokens, params))
    assert out.shape == (seq_len, batch, vocab_size)
    np.testing.assert_allclose(np.asarray(out), np.asarray(ref), rtol=1e-5, atol=1e-5)

    print("KERNEL_OK")
</pallas_src>

<mosaic_0001>
module attributes {stable_mosaic.version = 11 : i64} {
  func.func @rnnlm_kernel(%arg0: memref<64x1xi32, #tpu.memory_space<vmem>>, %arg1: memref<128x128xf32, #tpu.memory_space<vmem>>, %arg2: memref<128x128xf32, #tpu.memory_space<vmem>>, %arg3: memref<1x128xf32, #tpu.memory_space<vmem>>, %arg4: memref<128x128xf32, #tpu.memory_space<vmem>>, %arg5: memref<128x128xf32, #tpu.memory_space<vmem>>, %arg6: memref<1x128xf32, #tpu.memory_space<vmem>>, %arg7: memref<64x128xf32, #tpu.memory_space<vmem>>, %arg8: memref<64x128xf32, #tpu.memory_space<vmem>>) attributes {dimension_semantics = [], scalar_prefetch = 0 : i64, scratch_operands = 1 : i64, tpu.core_type = #tpu.core_type<tc>} {
    %c0 = arith.constant 0 : index
    %c0_0 = arith.constant 0 : index
    %0 = vector.load %arg0[%c0, %c0_0] : memref<64x1xi32, #tpu.memory_space<vmem>>, vector<64x1xi32>
    %1 = tpu.iota {dimensions = array<i32: 1>} : vector<64x128xi32>
    %2 = vector.broadcast %0 : vector<64x1xi32> to vector<64x128xi32>
    %3 = arith.cmpi eq, %2, %1 : vector<64x128xi32>
    %4 = arith.extui %3 : vector<64x128xi1> to vector<64x128xi32>
    %5 = arith.sitofp %4 : vector<64x128xi32> to vector<64x128xf32>
    %c0_1 = arith.constant 0 : index
    %c0_2 = arith.constant 0 : index
    %6 = vector.load %arg1[%c0_1, %c0_2] : memref<128x128xf32, #tpu.memory_space<vmem>>, vector<128x128xf32>
    %cst = arith.constant dense<0.000000e+00> : vector<64x128xf32>
    %7 = tpu.matmul %5, %6, %cst {dimension_numbers = #tpu.dot_dimension_numbers<[1], [0], [0], [1], [0, 0, 1, 1], [], []>} : vector<64x128xf32>, vector<128x128xf32>, vector<64x128xf32> -> vector<64x128xf32>
    %c0_3 = arith.constant 0 : index
    %c0_4 = arith.constant 0 : index
    %8 = vector.load %arg2[%c0_3, %c0_4] : memref<128x128xf32, #tpu.memory_space<vmem>>, vector<128x128xf32>
    %cst_5 = arith.constant dense<0.000000e+00> : vector<64x128xf32>
    %9 = tpu.matmul %7, %8, %cst_5 {dimension_numbers = #tpu.dot_dimension_numbers<[1], [0], [0], [1], [0, 0, 1, 1], [], []>} : vector<64x128xf32>, vector<128x128xf32>, vector<64x128xf32> -> vector<64x128xf32>
    %c0_6 = arith.constant 0 : index
    %c0_7 = arith.constant 0 : index
    %10 = vector.load %arg3[%c0_6, %c0_7] : memref<1x128xf32, #tpu.memory_space<vmem>>, vector<1x128xf32>
    %11 = vector.broadcast %10 : vector<1x128xf32> to vector<64x128xf32>
    %12 = arith.addf %9, %11 : vector<64x128xf32>
    %c0_8 = arith.constant 0 : index
    %c0_9 = arith.constant 0 : index
    %13 = vector.load %arg8[%c0_8, %c0_9] : memref<64x128xf32, #tpu.memory_space<vmem>>, vector<64x128xf32>
    tpu.vector_store %arg8[%c0_8, %c0_9], %12 {strides = array<i32>} : memref<64x128xf32, #tpu.memory_space<vmem>>, vector<64x128xf32>,
    %c0_10 = arith.constant 0 : index
    %c0_11 = arith.constant 0 : index
    %14 = vector.load %arg4[%c0_10, %c0_11] : memref<128x128xf32, #tpu.memory_space<vmem>>, vector<128x128xf32>
    %cst_12 = arith.constant 0.000000e+00 : f32
    %15 = vector.broadcast %cst_12 : f32 to vector<8x128xf32>
    %c0_13 = arith.constant 0 : index
    %c0_14 = arith.constant 0 : index
    %16 = vector.load %arg8[%c0_13, %c0_14] : memref<64x128xf32, #tpu.memory_space<vmem>>, vector<8x128xf32>
    %cst_15 = arith.constant dense<0.000000e+00> : vector<8x128xf32>
    %17 = tpu.matmul %15, %14, %cst_15 {dimension_numbers = #tpu.dot_dimension_numbers<[1], [0], [0], [1], [0, 0, 1, 1], [], []>} : vector<8x128xf32>, vector<128x128xf32>, vector<8x128xf32> -> vector<8x128xf32>
    %18 = arith.addf %16, %17 : vector<8x128xf32>
    %19 = math.tanh %18 : vector<8x128xf32>
    %c0_16 = arith.constant 0 : index
    %c0_17 = arith.constant 0 : index
    %20 = vector.load %arg8[%c0_16, %c0_17] : memref<64x128xf32, #tpu.memory_space<vmem>>, vector<8x128xf32>
    tpu.vector_store %arg8[%c0_16, %c0_17], %19 {strides = array<i32>} : memref<64x128xf32, #tpu.memory_space<vmem>>, vector<8x128xf32>,
    %c8 = arith.constant 8 : index
    %c0_18 = arith.constant 0 : index
    %21 = vector.load %arg8[%c8, %c0_18] : memref<64x128xf32, #tpu.memory_space<vmem>>, vector<8x128xf32>
    %cst_19 = arith.constant dense<0.000000e+00> : vector<8x128xf32>
    %22 = tpu.matmul %19, %14, %cst_19 {dimension_numbers = #tpu.dot_dimension_numbers<[1], [0], [0], [1], [0, 0, 1, 1], [], []>} : vector<8x128xf32>, vector<128x128xf32>, vector<8x128xf32> -> vector<8x128xf32>
    %23 = arith.addf %21, %22 : vector<8x128xf32>
    %24 = math.tanh %23 : vector<8x128xf32>
    %c8_20 = arith.constant 8 : index
    %c0_21 = arith.constant 0 : index
    %25 = vector.load %arg8[%c8_20, %c0_21] : memref<64x128xf32, #tpu.memory_space<vmem>>, vector<8x128xf32>
    tpu.vector_store %arg8[%c8_20, %c0_21], %24 {strides = array<i32>} : memref<64x128xf32, #tpu.memory_space<vmem>>, vector<8x128xf32>,
    %c16 = arith.constant 16 : index
    %c0_22 = arith.constant 0 : index
    %26 = vector.load %arg8[%c16, %c0_22] : memref<64x128xf32, #tpu.memory_space<vmem>>, vector<8x128xf32>
    %cst_23 = arith.constant dense<0.000000e+00> : vector<8x128xf32>
    %27 = tpu.matmul %24, %14, %cst_23 {dimension_numbers = #tpu.dot_dimension_numbers<[1], [0], [0], [1], [0, 0, 1, 1], [], []>} : vector<8x128xf32>, vector<128x128xf32>, vector<8x128xf32> -> vector<8x128xf32>
    %28 = arith.addf %26, %27 : vector<8x128xf32>
    %29 = math.tanh %28 : vector<8x128xf32>
    %c16_24 = arith.constant 16 : index
    %c0_25 = arith.constant 0 : index
    %30 = vector.load %arg8[%c16_24, %c0_25] : memref<64x128xf32, #tpu.memory_space<vmem>>, vector<8x128xf32>
    tpu.vector_store %arg8[%c16_24, %c0_25], %29 {strides = array<i32>} : memref<64x128xf32, #tpu.memory_space<vmem>>, vector<8x128xf32>,
    %c24 = arith.constant 24 : index
    %c0_26 = arith.constant 0 : index
    %31 = vector.load %arg8[%c24, %c0_26] : memref<64x128xf32, #tpu.memory_space<vmem>>, vector<8x128xf32>
    %cst_27 = arith.constant dense<0.000000e+00> : vector<8x128xf32>
    %32 = tpu.matmul %29, %14, %cst_27 {dimension_numbers = #tpu.dot_dimension_numbers<[1], [0], [0], [1], [0, 0, 1, 1], [], []>} : vector<8x128xf32>, vector<128x128xf32>, vector<8x128xf32> -> vector<8x128xf32>
    %33 = arith.addf %31, %32 : vector<8x128xf32>
    %34 = math.tanh %33 : vector<8x128xf32>
    %c24_28 = arith.constant 24 : index
    %c0_29 = arith.constant 0 : index
    %35 = vector.load %arg8[%c24_28, %c0_29] : memref<64x128xf32, #tpu.memory_space<vmem>>, vector<8x128xf32>
    tpu.vector_store %arg8[%c24_28, %c0_29], %34 {strides = array<i32>} : memref<64x128xf32, #tpu.memory_space<vmem>>, vector<8x128xf32>,
    %c32 = arith.constant 32 : index
    %c0_30 = arith.constant 0 : index
    %36 = vector.load %arg8[%c32, %c0_30] : memref<64x128xf32, #tpu.memory_space<vmem>>, vector<8x128xf32>
    %cst_31 = arith.constant dense<0.000000e+00> : vector<8x128xf32>
    %37 = tpu.matmul %34, %14, %cst_31 {dimension_numbers = #tpu.dot_dimension_numbers<[1], [0], [0], [1], [0, 0, 1, 1], [], []>} : vector<8x128xf32>, vector<128x128xf32>, vector<8x128xf32> -> vector<8x128xf32>
    %38 = arith.addf %36, %37 : vector<8x128xf32>
    %39 = math.tanh %38 : vector<8x128xf32>
    %c32_32 = arith.constant 32 : index
    %c0_33 = arith.constant 0 : index
    %40 = vector.load %arg8[%c32_32, %c0_33] : memref<64x128xf32, #tpu.memory_space<vmem>>, vector<8x128xf32>
    tpu.vector_store %arg8[%c32_32, %c0_33], %39 {strides = array<i32>} : memref<64x128xf32, #tpu.memory_space<vmem>>, vector<8x128xf32>,
    %c40 = arith.constant 40 : index
    %c0_34 = arith.constant 0 : index
    %41 = vector.load %arg8[%c40, %c0_34] : memref<64x128xf32, #tpu.memory_space<vmem>>, vector<8x128xf32>
    %cst_35 = arith.constant dense<0.000000e+00> : vector<8x128xf32>
    %42 = tpu.matmul %39, %14, %cst_35 {dimension_numbers = #tpu.dot_dimension_numbers<[1], [0], [0], [1], [0, 0, 1, 1], [], []>} : vector<8x128xf32>, vector<128x128xf32>, vector<8x128xf32> -> vector<8x128xf32>
    %43 = arith.addf %41, %42 : vector<8x128xf32>
    %44 = math.tanh %43 : vector<8x128xf32>
    %c40_36 = arith.constant 40 : index
    %c0_37 = arith.constant 0 : index
    %45 = vector.load %arg8[%c40_36, %c0_37] : memref<64x128xf32, #tpu.memory_space<vmem>>, vector<8x128xf32>
    tpu.vector_store %arg8[%c40_36, %c0_37], %44 {strides = array<i32>} : memref<64x128xf32, #tpu.memory_space<vmem>>, vector<8x128xf32>,
    %c48 = arith.constant 48 : index
    %c0_38 = arith.constant 0 : index
    %46 = vector.load %arg8[%c48, %c0_38] : memref<64x128xf32, #tpu.memory_space<vmem>>, vector<8x128xf32>
    %cst_39 = arith.constant dense<0.000000e+00> : vector<8x128xf32>
    %47 = tpu.matmul %44, %14, %cst_39 {dimension_numbers = #tpu.dot_dimension_numbers<[1], [0], [0], [1], [0, 0, 1, 1], [], []>} : vector<8x128xf32>, vector<128x128xf32>, vector<8x128xf32> -> vector<8x128xf32>
    %48 = arith.addf %46, %47 : vector<8x128xf32>
    %49 = math.tanh %48 : vector<8x128xf32>
    %c48_40 = arith.constant 48 : index
    %c0_41 = arith.constant 0 : index
    %50 = vector.load %arg8[%c48_40, %c0_41] : memref<64x128xf32, #tpu.memory_space<vmem>>, vector<8x128xf32>
    tpu.vector_store %arg8[%c48_40, %c0_41], %49 {strides = array<i32>} : memref<64x128xf32, #tpu.memory_space<vmem>>, vector<8x128xf32>,
    %c56 = arith.constant 56 : index
    %c0_42 = arith.constant 0 : index
    %51 = vector.load %arg8[%c56, %c0_42] : memref<64x128xf32, #tpu.memory_space<vmem>>, vector<8x128xf32>
    %cst_43 = arith.constant dense<0.000000e+00> : vector<8x128xf32>
    %52 = tpu.matmul %49, %14, %cst_43 {dimension_numbers = #tpu.dot_dimension_numbers<[1], [0], [0], [1], [0, 0, 1, 1], [], []>} : vector<8x128xf32>, vector<128x128xf32>, vector<8x128xf32> -> vector<8x128xf32>
    %53 = arith.addf %51, %52 : vector<8x128xf32>
    %54 = math.tanh %53 : vector<8x128xf32>
    %c56_44 = arith.constant 56 : index
    %c0_45 = arith.constant 0 : index
    %55 = vector.load %arg8[%c56_44, %c0_45] : memref<64x128xf32, #tpu.memory_space<vmem>>, vector<8x128xf32>
    tpu.vector_store %arg8[%c56_44, %c0_45], %54 {strides = array<i32>} : memref<64x128xf32, #tpu.memory_space<vmem>>, vector<8x128xf32>,
    %c0_46 = arith.constant 0 : index
    %c0_47 = arith.constant 0 : index
    %56 = vector.load %arg8[%c0_46, %c0_47] : memref<64x128xf32, #tpu.memory_space<vmem>>, vector<64x128xf32>
    %c0_48 = arith.constant 0 : index
    %c0_49 = arith.constant 0 : index
    %57 = vector.load %arg5[%c0_48, %c0_49] : memref<128x128xf32, #tpu.memory_space<vmem>>, vector<128x128xf32>
    %cst_50 = arith.constant dense<0.000000e+00> : vector<64x128xf32>
    %58 = tpu.matmul %56, %57, %cst_50 {dimension_numbers = #tpu.dot_dimension_numbers<[1], [0], [0], [1], [0, 0, 1, 1], [], []>} : vector<64x128xf32>, vector<128x128xf32>, vector<64x128xf32> -> vector<64x128xf32>
    %c0_51 = arith.constant 0 : index
    %c0_52 = arith.constant 0 : index
    %59 = vector.load %arg6[%c0_51, %c0_52] : memref<1x128xf32, #tpu.memory_space<vmem>>, vector<1x128xf32>
    %60 = vector.broadcast %59 : vector<1x128xf32> to vector<64x128xf32>
    %61 = arith.addf %58, %60 : vector<64x128xf32>
    %cst_53 = arith.constant dense<0xFF800000> : vector<64xf32>
    %62 = vector.multi_reduction <maximumf>, %61, %cst_53 [1] : vector<64x128xf32> to vector<64xf32>
    %63 = vector.shape_cast %62 : vector<64xf32> to vector<64x1xf32>
    %64 = vector.broadcast %63 : vector<64x1xf32> to vector<64x128xf32>
    %65 = arith.subf %61, %64 : vector<64x128xf32>
    %66 = math.exp %65 : vector<64x128xf32>
    %cst_54 = arith.constant dense<0.000000e+00> : vector<64xf32>
    %67 = vector.multi_reduction <add>, %66, %cst_54 [1] : vector<64x128xf32> to vector<64xf32>
    %68 = vector.shape_cast %67 : vector<64xf32> to vector<64x1xf32>
    %69 = math.log %68 : vector<64x1xf32>
    %70 = vector.broadcast %69 : vector<64x1xf32> to vector<64x128xf32>
    %71 = arith.subf %65, %70 : vector<64x128xf32>
    %c0_55 = arith.constant 0 : index
    %c0_56 = arith.constant 0 : index
    %72 = vector.load %arg7[%c0_55, %c0_56] : memref<64x128xf32, #tpu.memory_space<vmem>>, vector<64x128xf32>
    tpu.vector_store %arg7[%c0_55, %c0_56], %71 {strides = array<i32>} : memref<64x128xf32, #tpu.memory_space<vmem>>, vector<64x128xf32>,
    return
  }
}

</mosaic_0001>

<llo_original>
// kernel: rnnlm_forward.1
$region0: #{rnnlm_forward.1}
  #allocation0 [shape = 'u32[]', space=smem, size = 0x4, offset = 0x4, fixed_abs, tag = 'smem constant byte address 0x4 - core index']
  #allocation1 [shape = 'u32[72,128]{1,0:T(1,128)}', space=vmem, size = 0x9000, scoped, tag = 'internal scratch']
  #allocation2 [shape = 'f32[64,128]{1,0:T(8,128)}', space=vmem, size = 0x8000, scoped, tag = 'scratch operand']
  %s0 = inlined_call_operand.vmem [shape: s32[64,1], index: 0, kind: input, shape index: {}]
  %s1 = inlined_call_operand.hbm [shape: f32[128,128], index: 1, kind: input, shape index: {}]
  %s2 = inlined_call_operand.hbm [shape: f32[128,128], index: 2, kind: input, shape index: {}]
  %s3 = inlined_call_operand.vmem [shape: f32[1,128], index: 3, kind: input, shape index: {}]
  %s4 = inlined_call_operand.hbm [shape: f32[128,128], index: 4, kind: input, shape index: {}]
  %s5 = inlined_call_operand.hbm [shape: f32[128,128], index: 5, kind: input, shape index: {}]
  %s6 = inlined_call_operand.vmem [shape: f32[1,128], index: 6, kind: input, shape index: {}]
  %s7 = inlined_call_operand.vmem [shape: f32[64,128], index: 7, kind: output, shape index: {}]
  %s8 = sld [smem:[#allocation0]]
  $region54: #{rnnlm_forward.1} parent=0
    _
  %s10 = ssub.s32 1, %s8
  %s11 = scalar_select 0, %s10, %s8
  $region1: #{rnnlm_forward.1} parent=0
    #allocation3 [shape = 'u8[65536]{0}', space=vmem, size = 0x10000, scoped, tag = 'input window, operand 1, single buffered']
    #allocation4 [shape = 's32[1]{0}', space=sflag, size = 0x4, scoped, tag = 'scoped memory for rnnlm_forward.1']
    #allocation5 [shape = 'u8[65536]{0}', space=vmem, size = 0x10000, scoped, tag = 'input window, operand 2, single buffered']
    #allocation6 [shape = 's32[1]{0}', space=sflag, size = 0x4, scoped, tag = 'scoped memory for rnnlm_forward.1']
    #allocation7 [shape = 'u8[65536]{0}', space=vmem, size = 0x10000, scoped, tag = 'input window, operand 4, single buffered']
    #allocation8 [shape = 'u8[65536]{0}', space=vmem, size = 0x10000, scoped, tag = 'input window, operand 5, single buffered']
    #allocation9 [shape = 's32[1]{0}', space=sflag, size = 0x4, scoped, tag = 'scoped memory for rnnlm_forward.1']
    %12 = vsyncpa [#allocation4], 0
    %13 = vsyncpa [#allocation6], 0
    %14 = vsyncpa [#allocation9], 0
    // Predicated region
    $region2: #{rnnlm_forward.1} parent=1 // pred_check
      _
    $region3: #{rnnlm_forward.1} parent=1 // pred_check_branch
      %16 = sbr.rel (0) target = $region5
    $region4: #{rnnlm_forward.1} parent=1 // pred_region
      _
    $region5: #{rnnlm_forward.1} parent=1 // pred_fallthru
      _
    // Predicated region
    $region6: #{rnnlm_forward.1} parent=1 // pred_check
      _
    $region7: #{rnnlm_forward.1} parent=1 // pred_check_branch
      %18 = sbr.rel (0) target = $region9
    $region8: #{rnnlm_forward.1} parent=1 // pred_region
      %20 = vsyncadd [#allocation4], 0
      %s21 = sshll.u32 %s1, 4
      %s22 = int_to_ptr.hbm [resolvable:$true] %s21
      %s23 = sshll.u32 [#allocation3], 4
      %s24 = int_to_ptr.vmem [resolvable:$true] %s23
      %29 = dma.hbm_to_vmem [thread:$0]  %s22, 2048, %s24, [#allocation4], 128, 128, 8
    $region9: #{rnnlm_forward.1} parent=1 // pred_fallthru
      _
    // Predicated region
    $region10: #{rnnlm_forward.1} parent=1 // pred_check
      _
    $region11: #{rnnlm_forward.1} parent=1 // pred_check_branch
      %31 = sbr.rel (0) target = $region13
    $region12: #{rnnlm_forward.1} parent=1 // pred_region
      %33 = vsyncadd [#allocation6], 0
      %s34 = sshll.u32 %s2, 4
      %s35 = int_to_ptr.hbm [resolvable:$true] %s34
      %s36 = sshll.u32 [#allocation5], 4
      %s37 = int_to_ptr.vmem [resolvable:$true] %s36
      %42 = dma.hbm_to_vmem [thread:$0]  %s35, 2048, %s37, [#allocation6], 128, 128, 8
    $region13: #{rnnlm_forward.1} parent=1 // pred_fallthru
      _
    // Predicated region
    $region14: #{rnnlm_forward.1} parent=1 // pred_check
      _
    $region15: #{rnnlm_forward.1} parent=1 // pred_check_branch
      %44 = sbr.rel (0) target = $region17
    $region16: #{rnnlm_forward.1} parent=1 // pred_region
      _
    $region17: #{rnnlm_forward.1} parent=1 // pred_fallthru
      _
    // Predicated region
    $region18: #{rnnlm_forward.1} parent=1 // pred_check
      _
    $region19: #{rnnlm_forward.1} parent=1 // pred_check_branch
      %46 = sbr.rel (0) target = $region21
    $region20: #{rnnlm_forward.1} parent=1 // pred_region
      %48 = vsyncadd [#allocation6], 0
      %s49 = sshll.u32 %s4, 4
      %s50 = int_to_ptr.hbm [resolvable:$true] %s49
      %s51 = sshll.u32 [#allocation7], 4
      %s52 = int_to_ptr.vmem [resolvable:$true] %s51
      %57 = dma.hbm_to_vmem [thread:$0]  %s50, 2048, %s52, [#allocation6], 128, 128, 8
    $region21: #{rnnlm_forward.1} parent=1 // pred_fallthru
      _
    // Predicated region
    $region22: #{rnnlm_forward.1} parent=1 // pred_check
      _
    $region23: #{rnnlm_forward.1} parent=1 // pred_check_branch
      %59 = sbr.rel (0) target = $region25
    $region24: #{rnnlm_forward.1} parent=1 // pred_region
      %61 = vsyncadd [#allocation9], 0
      %s62 = sshll.u32 %s5, 4
      %s63 = int_to_ptr.hbm [resolvable:$true] %s62
      %s64 = sshll.u32 [#allocation8], 4
      %s65 = int_to_ptr.vmem [resolvable:$true] %s64
      %70 = dma.hbm_to_vmem [thread:$0]  %s63, 2048, %s65, [#allocation9], 128, 128, 8
    $region25: #{rnnlm_forward.1} parent=1 // pred_fallthru
      _
    // Predicated region
    $region26: #{rnnlm_forward.1} parent=1 // pred_check
      _
    $region27: #{rnnlm_forward.1} parent=1 // pred_check_branch
      %72 = sbr.rel (0) target = $region29
    $region28: #{rnnlm_forward.1} parent=1 // pred_region
      _
    $region29: #{rnnlm_forward.1} parent=1 // pred_fallthru
      _
    // Predicated region
    $region30: #{rnnlm_forward.1} parent=1 // pred_check
      _
    $region31: #{rnnlm_forward.1} parent=1 // pred_check_branch
      %74 = sbr.rel (0) target = $region33
    $region32: #{rnnlm_forward.1} parent=1 // pred_region
      %76 = dma.done [#allocation4], 2048
    $region33: #{rnnlm_forward.1} parent=1 // pred_fallthru
      _
    // Predicated region
    $region34: #{rnnlm_forward.1} parent=1 // pred_check
      _
    $region35: #{rnnlm_forward.1} parent=1 // pred_check_branch
      %78 = sbr.rel (0) target = $region37
    $region36: #{rnnlm_forward.1} parent=1 // pred_region
      %80 = dma.done [#allocation6], 2048
    $region37: #{rnnlm_forward.1} parent=1 // pred_fallthru
      _
    // Predicated region
    $region38: #{rnnlm_forward.1} parent=1 // pred_check
      _
    $region39: #{rnnlm_forward.1} parent=1 // pred_check_branch
      %82 = sbr.rel (0) target = $region41
    $region40: #{rnnlm_forward.1} parent=1 // pred_region
      %84 = dma.done [#allocation6], 2048
    $region41: #{rnnlm_forward.1} parent=1 // pred_fallthru
      _
    // Predicated region
    $region42: #{rnnlm_forward.1} parent=1 // pred_check
      _
    $region43: #{rnnlm_forward.1} parent=1 // pred_check_branch
      %86 = sbr.rel (0) target = $region45
    $region44: #{rnnlm_forward.1} parent=1 // pred_region
      %88 = dma.done [#allocation9], 2048
    $region45: #{rnnlm_forward.1} parent=1 // pred_fallthru
      _
    %v89 = vld [vmem:[%s0] sm:$0xff]
    %v90 = vld [vmem:[%s0 + $0x8] sm:$0xff]
    %v91 = vld [vmem:[%s0 + $0x10] sm:$0xff]
    %v92 = vld [vmem:[%s0 + $0x18] sm:$0xff]
    %v93 = vld [vmem:[%s0 + $0x20] sm:$0xff]
    %v94 = vld [vmem:[%s0 + $0x28] sm:$0xff]
    %v95 = vld [vmem:[%s0 + $0x30] sm:$0xff]
    %v96 = vld [vmem:[%s0 + $0x38] sm:$0xff]
    %v97 = vlaneseq
    %v98 = vand.u32 %v97, 127
    %99 = vset.pattern.permute.xlu0 0
    %100 = vperm.xlu0 %99, %v89
    %v101 = vpop.permute.xlu0 %100
    %102 = vset.pattern.permute.xlu0 0
    %103 = vperm.xlu0 %102, %v90
    %v104 = vpop.permute.xlu0 %103
    %105 = vset.pattern.permute.xlu0 0
    %106 = vperm.xlu0 %105, %v91
    %v107 = vpop.permute.xlu0 %106
    %108 = vset.pattern.permute.xlu0 0
    %109 = vperm.xlu0 %108, %v92
    %v110 = vpop.permute.xlu0 %109
    %111 = vset.pattern.permute.xlu0 0
    %112 = vperm.xlu0 %111, %v93
    %v113 = vpop.permute.xlu0 %112
    %114 = vset.pattern.permute.xlu0 0
    %115 = vperm.xlu0 %114, %v94
    %v116 = vpop.permute.xlu0 %115
    %117 = vset.pattern.permute.xlu0 0
    %118 = vperm.xlu0 %117, %v95
    %v119 = vpop.permute.xlu0 %118
    %120 = vset.pattern.permute.xlu0 0
    %121 = vperm.xlu0 %120, %v96
    %v122 = vpop.permute.xlu0 %121
    %vm123 = vcmp.eq.s32.totalorder %v101, %v98
    %vm124 = vcmp.eq.s32.totalorder %v104, %v98
    %vm125 = vcmp.eq.s32.totalorder %v107, %v98
    %vm126 = vcmp.eq.s32.totalorder %v110, %v98
    %vm127 = vcmp.eq.s32.totalorder %v113, %v98
    %vm128 = vcmp.eq.s32.totalorder %v116, %v98
    %vm129 = vcmp.eq.s32.totalorder %v119, %v98
    %vm130 = vcmp.eq.s32.totalorder %v122, %v98
    %v131 = vsel %vm123, 1, 0
    %v132 = vsel %vm124, 1, 0
    %v133 = vsel %vm125, 1, 0
    %v134 = vsel %vm126, 1, 0
    %v135 = vsel %vm127, 1, 0
    %v136 = vsel %vm128, 1, 0
    %v137 = vsel %vm129, 1, 0
    %v138 = vsel %vm130, 1, 0
    %v139 = vcvt.s32.f32 %v131
    %v140 = vcvt.s32.f32 %v132
    %v141 = vcvt.s32.f32 %v133
    %v142 = vcvt.s32.f32 %v134
    %v143 = vcvt.s32.f32 %v135
    %v144 = vcvt.s32.f32 %v136
    %v145 = vcvt.s32.f32 %v137
    %v146 = vcvt.s32.f32 %v138
    %v147 = vld [vmem:[#allocation3] sm:$0xff]
    %v148 = vld [vmem:[#allocation3 + $0x8] sm:$0xff]
    %v149 = vld [vmem:[#allocation3 + $0x10] sm:$0xff]
    %v150 = vld [vmem:[#allocation3 + $0x18] sm:$0xff]
    %v151 = vld [vmem:[#allocation3 + $0x20] sm:$0xff]
    %v152 = vld [vmem:[#allocation3 + $0x28] sm:$0xff]
    %v153 = vld [vmem:[#allocation3 + $0x30] sm:$0xff]
    %v154 = vld [vmem:[#allocation3 + $0x38] sm:$0xff]
    %v155 = vld [vmem:[#allocation3 + $0x40] sm:$0xff]
    %v156 = vld [vmem:[#allocation3 + $0x48] sm:$0xff]
    %v157 = vld [vmem:[#allocation3 + $0x50] sm:$0xff]
    %v158 = vld [vmem:[#allocation3 + $0x58] sm:$0xff]
    %v159 = vld [vmem:[#allocation3 + $0x60] sm:$0xff]
    %v160 = vld [vmem:[#allocation3 + $0x68] sm:$0xff]
    %v161 = vld [vmem:[#allocation3 + $0x70] sm:$0xff]
    %v162 = vld [vmem:[#allocation3 + $0x78] sm:$0xff]
    %163 = vmatpush.msra.mxu0 %v162
    %164 = vmatpush.msra.mxu0 %v161
    %165 = vmatpush.msra.mxu0 %v160
    %166 = vmatpush.msra.mxu0 %v159
    %167 = vmatpush.msra.mxu0 %v158
    %168 = vmatpush.msra.mxu0 %v157
    %169 = vmatpush.msra.mxu0 %v156
    %170 = vmatpush.msra.mxu0 %v155
    %171 = vmatpush.msra.mxu0 %v154
    %172 = vmatpush.msra.mxu0 %v153
    %173 = vmatpush.msra.mxu0 %v152
    %174 = vmatpush.msra.mxu0 %v151
    %175 = vmatpush.msra.mxu0 %v150
    %176 = vmatpush.msra.mxu0 %v149
    %177 = vmatpush.msra.mxu0 %v148
    %178 = vmatpush.msra.mxu0 %v147
    %179 = vmatmul.f32.gmra.mxu0 %v139
    %v180 = vpop.f32.mrf.mxu0
    %v181 = vadd.f32 0.0, %v180
    %182 = vmatmul.f32.gmra.mxu0 %v140
    %v183 = vpop.f32.mrf.mxu0
    %v184 = vadd.f32 0.0, %v183
    %185 = vmatmul.f32.gmra.mxu0 %v141
    %v186 = vpop.f32.mrf.mxu0
    %v187 = vadd.f32 0.0, %v186
    %188 = vmatmul.f32.gmra.mxu0 %v142
    %v189 = vpop.f32.mrf.mxu0
    %v190 = vadd.f32 0.0, %v189
    %191 = vmatmul.f32.gmra.mxu0 %v143
    %v192 = vpop.f32.mrf.mxu0
    %v193 = vadd.f32 0.0, %v192
    %194 = vmatmul.f32.gmra.mxu0 %v144
    %v195 = vpop.f32.mrf.mxu0
    %v196 = vadd.f32 0.0, %v195
    %197 = vmatmul.f32.gmra.mxu0 %v145
    %v198 = vpop.f32.mrf.mxu0
    %v199 = vadd.f32 0.0, %v198
    %200 = vmatmul.f32.gmra.mxu0 %v146
    %v201 = vpop.f32.mrf.mxu0
    %v202 = vadd.f32 0.0, %v201
    %203 = vdwg.mxu0
    %v204 = vld [vmem:[#allocation5] sm:$0xff]
    %v205 = vld [vmem:[#allocation5 + $0x8] sm:$0xff]
    %v206 = vld [vmem:[#allocation5 + $0x10] sm:$0xff]
    %v207 = vld [vmem:[#allocation5 + $0x18] sm:$0xff]
    %v208 = vld [vmem:[#allocation5 + $0x20] sm:$0xff]
    %v209 = vld [vmem:[#allocation5 + $0x28] sm:$0xff]
    %v210 = vld [vmem:[#allocation5 + $0x30] sm:$0xff]
    %v211 = vld [vmem:[#allocation5 + $0x38] sm:$0xff]
    %v212 = vld [vmem:[#allocation5 + $0x40] sm:$0xff]
    %v213 = vld [vmem:[#allocation5 + $0x48] sm:$0xff]
    %v214 = vld [vmem:[#allocation5 + $0x50] sm:$0xff]
    %v215 = vld [vmem:[#allocation5 + $0x58] sm:$0xff]
    %v216 = vld [vmem:[#allocation5 + $0x60] sm:$0xff]
    %v217 = vld [vmem:[#allocation5 + $0x68] sm:$0xff]
    %v218 = vld [vmem:[#allocation5 + $0x70] sm:$0xff]
    %v219 = vld [vmem:[#allocation5 + $0x78] sm:$0xff]
    %v220 = vld [vmem:[%s3] sm:$0x1]
    %v222 = vperm.slane %v220, 0
    %224 = vmatpush.msra.mxu0 %v219
    %225 = vmatpush.msra.mxu0 %v218
    %226 = vmatpush.msra.mxu0 %v217
    %227 = vmatpush.msra.mxu0 %v216
    %228 = vmatpush.msra.mxu0 %v215
    %229 = vmatpush.msra.mxu0 %v214
    %230 = vmatpush.msra.mxu0 %v213
    %231 = vmatpush.msra.mxu0 %v212
    %232 = vmatpush.msra.mxu0 %v211
    %233 = vmatpush.msra.mxu0 %v210
    %234 = vmatpush.msra.mxu0 %v209
    %235 = vmatpush.msra.mxu0 %v208
    %236 = vmatpush.msra.mxu0 %v207
    %237 = vmatpush.msra.mxu0 %v206
    %238 = vmatpush.msra.mxu0 %v205
    %239 = vmatpush.msra.mxu0 %v204
    %240 = vmatmul.f32.gmra.mxu0 %v181
    %v241 = vpop.f32.mrf.mxu0
    %v242 = vadd.f32 %v222, %v241
    %243 = vmatmul.f32.gmra.mxu0 %v184
    %v244 = vpop.f32.mrf.mxu0
    %v245 = vadd.f32 %v222, %v244
    %246 = vmatmul.f32.gmra.mxu0 %v187
    %v247 = vpop.f32.mrf.mxu0
    %v248 = vadd.f32 %v222, %v247
    %249 = vmatmul.f32.gmra.mxu0 %v190
    %v250 = vpop.f32.mrf.mxu0
    %v251 = vadd.f32 %v222, %v250
    %252 = vmatmul.f32.gmra.mxu0 %v193
    %v253 = vpop.f32.mrf.mxu0
    %v254 = vadd.f32 %v222, %v253
    %255 = vmatmul.f32.gmra.mxu0 %v196
    %v256 = vpop.f32.mrf.mxu0
    %v257 = vadd.f32 %v222, %v256
    %258 = vmatmul.f32.gmra.mxu0 %v199
    %v259 = vpop.f32.mrf.mxu0
    %v260 = vadd.f32 %v222, %v259
    %261 = vmatmul.f32.gmra.mxu0 %v202
    %v262 = vpop.f32.mrf.mxu0
    %v263 = vadd.f32 %v222, %v262
    %264 = vdwg.mxu0
    %265 = vst [vmem:[#allocation2] sm:$0xff] %v242
    %266 = vst [vmem:[#allocation2 + $0x8] sm:$0xff] %v245
    %267 = vst [vmem:[#allocation2 + $0x10] sm:$0xff] %v248
    %268 = vst [vmem:[#allocation2 + $0x18] sm:$0xff] %v251
    %269 = vst [vmem:[#allocation2 + $0x20] sm:$0xff] %v254
    %270 = vst [vmem:[#allocation2 + $0x28] sm:$0xff] %v257
    %271 = vst [vmem:[#allocation2 + $0x30] sm:$0xff] %v260
    %272 = vst [vmem:[#allocation2 + $0x38] sm:$0xff] %v263
    %v273 = vld [vmem:[#allocation7] sm:$0xff]
    %v274 = vld [vmem:[#allocation7 + $0x8] sm:$0xff]
    %v275 = vld [vmem:[#allocation7 + $0x10] sm:$0xff]
    %v276 = vld [vmem:[#allocation7 + $0x18] sm:$0xff]
    %v277 = vld [vmem:[#allocation7 + $0x20] sm:$0xff]
    %v278 = vld [vmem:[#allocation7 + $0x28] sm:$0xff]
    %v279 = vld [vmem:[#allocation7 + $0x30] sm:$0xff]
    %v280 = vld [vmem:[#allocation7 + $0x38] sm:$0xff]
    %v281 = vld [vmem:[#allocation7 + $0x40] sm:$0xff]
    %v282 = vld [vmem:[#allocation7 + $0x48] sm:$0xff]
    %v283 = vld [vmem:[#allocation7 + $0x50] sm:$0xff]
    %v284 = vld [vmem:[#allocation7 + $0x58] sm:$0xff]
    %v285 = vld [vmem:[#allocation7 + $0x60] sm:$0xff]
    %v286 = vld [vmem:[#allocation7 + $0x68] sm:$0xff]
    %v287 = vld [vmem:[#allocation7 + $0x70] sm:$0xff]
    %v288 = vld [vmem:[#allocation7 + $0x78] sm:$0xff]
    %v289 = vld [vmem:[#allocation2] sm:$0xff]
    %290 = vmatpush.msra.mxu0 %v288
    %291 = vmatpush.msra.mxu0 %v287
    %292 = vmatpush.msra.mxu0 %v286
    %293 = vmatpush.msra.mxu0 %v285
    %294 = vmatpush.msra.mxu0 %v284
    %295 = vmatpush.msra.mxu0 %v283
    %296 = vmatpush.msra.mxu0 %v282
    %297 = vmatpush.msra.mxu0 %v281
    %298 = vmatpush.msra.mxu0 %v280
    %299 = vmatpush.msra.mxu0 %v279
    %300 = vmatpush.msra.mxu0 %v278
    %301 = vmatpush.msra.mxu0 %v277
    %302 = vmatpush.msra.mxu0 %v276
    %303 = vmatpush.msra.mxu0 %v275
    %304 = vmatpush.msra.mxu0 %v274
    %305 = vmatpush.msra.mxu0 %v273
    %306 = vmatmul.f32.gmra.mxu0 0.0
    %v307 = vpop.f32.mrf.mxu0
    %v308 = vadd.f32 0.0, %v307
    %309 = vdwg.mxu0
    %v310 = vadd.f32 %v289, %v308
    %v311 = vtanh.pop %v310
    %312 = vst [vmem:[#allocation2] sm:$0xff] %v311
    %v313 = vld [vmem:[#allocation2 + $0x8] sm:$0xff]
    %314 = vmatpush.msra.mxu0 %v288
    %315 = vmatpush.msra.mxu0 %v287
    %316 = vmatpush.msra.mxu0 %v286
    %317 = vmatpush.msra.mxu0 %v285
    %318 = vmatpush.msra.mxu0 %v284
    %319 = vmatpush.msra.mxu0 %v283
    %320 = vmatpush.msra.mxu0 %v282
    %321 = vmatpush.msra.mxu0 %v281
    %322 = vmatpush.msra.mxu0 %v280
    %323 = vmatpush.msra.mxu0 %v279
    %324 = vmatpush.msra.mxu0 %v278
    %325 = vmatpush.msra.mxu0 %v277
    %326 = vmatpush.msra.mxu0 %v276
    %327 = vmatpush.msra.mxu0 %v275
    %328 = vmatpush.msra.mxu0 %v274
    %329 = vmatpush.msra.mxu0 %v273
    %330 = vmatmul.f32.gmra.mxu0 %v311
    %v331 = vpop.f32.mrf.mxu0
    %v332 = vadd.f32 0.0, %v331
    %333 = vdwg.mxu0
    %v334 = vadd.f32 %v313, %v332
    %v335 = vtanh.pop %v334
    %336 = vst [vmem:[#allocation2 + $0x8] sm:$0xff] %v335
    %v337 = vld [vmem:[#allocation2 + $0x10] sm:$0xff]
    %338 = vmatpush.msra.mxu0 %v288
    %339 = vmatpush.msra.mxu0 %v287
    %340 = vmatpush.msra.mxu0 %v286
    %341 = vmatpush.msra.mxu0 %v285
    %342 = vmatpush.msra.mxu0 %v284
    %343 = vmatpush.msra.mxu0 %v283
    %344 = vmatpush.msra.mxu0 %v282
    %345 = vmatpush.msra.mxu0 %v281
    %346 = vmatpush.msra.mxu0 %v280
    %347 = vmatpush.msra.mxu0 %v279
    %348 = vmatpush.msra.mxu0 %v278
    %349 = vmatpush.msra.mxu0 %v277
    %350 = vmatpush.msra.mxu0 %v276
    %351 = vmatpush.msra.mxu0 %v275
    %352 = vmatpush.msra.mxu0 %v274
    %353 = vmatpush.msra.mxu0 %v273
    %354 = vmatmul.f32.gmra.mxu0 %v335
    %v355 = vpop.f32.mrf.mxu0
    %v356 = vadd.f32 0.0, %v355
    %357 = vdwg.mxu0
    %v358 = vadd.f32 %v337, %v356
    %v359 = vtanh.pop %v358
    %360 = vst [vmem:[#allocation2 + $0x10] sm:$0xff] %v359
    %v361 = vld [vmem:[#allocation2 + $0x18] sm:$0xff]
    %362 = vmatpush.msra.mxu0 %v288
    %363 = vmatpush.msra.mxu0 %v287
    %364 = vmatpush.msra.mxu0 %v286
    %365 = vmatpush.msra.mxu0 %v285
    %366 = vmatpush.msra.mxu0 %v284
    %367 = vmatpush.msra.mxu0 %v283
    %368 = vmatpush.msra.mxu0 %v282
    %369 = vmatpush.msra.mxu0 %v281
    %370 = vmatpush.msra.mxu0 %v280
    %371 = vmatpush.msra.mxu0 %v279
    %372 = vmatpush.msra.mxu0 %v278
    %373 = vmatpush.msra.mxu0 %v277
    %374 = vmatpush.msra.mxu0 %v276
    %375 = vmatpush.msra.mxu0 %v275
    %376 = vmatpush.msra.mxu0 %v274
    %377 = vmatpush.msra.mxu0 %v273
    %378 = vmatmul.f32.gmra.mxu0 %v359
    %v379 = vpop.f32.mrf.mxu0
    %v380 = vadd.f32 0.0, %v379
    %381 = vdwg.mxu0
    %v382 = vadd.f32 %v361, %v380
    %v383 = vtanh.pop %v382
    %384 = vst [vmem:[#allocation2 + $0x18] sm:$0xff] %v383
    %v385 = vld [vmem:[#allocation2 + $0x20] sm:$0xff]
    %386 = vmatpush.msra.mxu0 %v288
    %387 = vmatpush.msra.mxu0 %v287
    %388 = vmatpush.msra.mxu0 %v286
    %389 = vmatpush.msra.mxu0 %v285
    %390 = vmatpush.msra.mxu0 %v284
    %391 = vmatpush.msra.mxu0 %v283
    %392 = vmatpush.msra.mxu0 %v282
    %393 = vmatpush.msra.mxu0 %v281
    %394 = vmatpush.msra.mxu0 %v280
    %395 = vmatpush.msra.mxu0 %v279
    %396 = vmatpush.msra.mxu0 %v278
    %397 = vmatpush.msra.mxu0 %v277
    %398 = vmatpush.msra.mxu0 %v276
    %399 = vmatpush.msra.mxu0 %v275
    %400 = vmatpush.msra.mxu0 %v274
    %401 = vmatpush.msra.mxu0 %v273
    %402 = vmatmul.f32.gmra.mxu0 %v383
    %v403 = vpop.f32.mrf.mxu0
    %v404 = vadd.f32 0.0, %v403
    %405 = vdwg.mxu0
    %v406 = vadd.f32 %v385, %v404
    %v407 = vtanh.pop %v406
    %408 = vst [vmem:[#allocation2 + $0x20] sm:$0xff] %v407
    %v409 = vld [vmem:[#allocation2 + $0x28] sm:$0xff]
    %410 = vmatpush.msra.mxu0 %v288
    %411 = vmatpush.msra.mxu0 %v287
    %412 = vmatpush.msra.mxu0 %v286
    %413 = vmatpush.msra.mxu0 %v285
    %414 = vmatpush.msra.mxu0 %v284
    %415 = vmatpush.msra.mxu0 %v283
    %416 = vmatpush.msra.mxu0 %v282
    %417 = vmatpush.msra.mxu0 %v281
    %418 = vmatpush.msra.mxu0 %v280
    %419 = vmatpush.msra.mxu0 %v279
    %420 = vmatpush.msra.mxu0 %v278
    %421 = vmatpush.msra.mxu0 %v277
    %422 = vmatpush.msra.mxu0 %v276
    %423 = vmatpush.msra.mxu0 %v275
    %424 = vmatpush.msra.mxu0 %v274
    %425 = vmatpush.msra.mxu0 %v273
    %426 = vmatmul.f32.gmra.mxu0 %v407
    %v427 = vpop.f32.mrf.mxu0
    %v428 = vadd.f32 0.0, %v427
    %429 = vdwg.mxu0
    %v430 = vadd.f32 %v409, %v428
    %v431 = vtanh.pop %v430
    %432 = vst [vmem:[#allocation2 + $0x28] sm:$0xff] %v431
    %v433 = vld [vmem:[#allocation2 + $0x30] sm:$0xff]
    %434 = vmatpush.msra.mxu0 %v288
    %435 = vmatpush.msra.mxu0 %v287
    %436 = vmatpush.msra.mxu0 %v286
    %437 = vmatpush.msra.mxu0 %v285
    %438 = vmatpush.msra.mxu0 %v284
    %439 = vmatpush.msra.mxu0 %v283
    %440 = vmatpush.msra.mxu0 %v282
    %441 = vmatpush.msra.mxu0 %v281
    %442 = vmatpush.msra.mxu0 %v280
    %443 = vmatpush.msra.mxu0 %v279
    %444 = vmatpush.msra.mxu0 %v278
    %445 = vmatpush.msra.mxu0 %v277
    %446 = vmatpush.msra.mxu0 %v276
    %447 = vmatpush.msra.mxu0 %v275
    %448 = vmatpush.msra.mxu0 %v274
    %449 = vmatpush.msra.mxu0 %v273
    %450 = vmatmul.f32.gmra.mxu0 %v431
    %v451 = vpop.f32.mrf.mxu0
    %v452 = vadd.f32 0.0, %v451
    %453 = vdwg.mxu0
    %v454 = vadd.f32 %v433, %v452
    %v455 = vtanh.pop %v454
    %456 = vst [vmem:[#allocation2 + $0x30] sm:$0xff] %v455
    %v457 = vld [vmem:[#allocation2 + $0x38] sm:$0xff]
    %458 = vmatpush.msra.mxu0 %v288
    %459 = vmatpush.msra.mxu0 %v287
    %460 = vmatpush.msra.mxu0 %v286
    %461 = vmatpush.msra.mxu0 %v285
    %462 = vmatpush.msra.mxu0 %v284
    %463 = vmatpush.msra.mxu0 %v283
    %464 = vmatpush.msra.mxu0 %v282
    %465 = vmatpush.msra.mxu0 %v281
    %466 = vmatpush.msra.mxu0 %v280
    %467 = vmatpush.msra.mxu0 %v279
    %468 = vmatpush.msra.mxu0 %v278
    %469 = vmatpush.msra.mxu0 %v277
    %470 = vmatpush.msra.mxu0 %v276
    %471 = vmatpush.msra.mxu0 %v275
    %472 = vmatpush.msra.mxu0 %v274
    %473 = vmatpush.msra.mxu0 %v273
    %474 = vmatmul.f32.gmra.mxu0 %v455
    %v475 = vpop.f32.mrf.mxu0
    %v476 = vadd.f32 0.0, %v475
    %477 = vdwg.mxu0
    %v478 = vadd.f32 %v457, %v476
    %v479 = vtanh.pop %v478
    %480 = vst [vmem:[#allocation2 + $0x38] sm:$0xff] %v479
    %v481 = vld [vmem:[#allocation2] sm:$0xff]
    %v482 = vld [vmem:[#allocation2 + $0x8] sm:$0xff]
    %v483 = vld [vmem:[#allocation2 + $0x10] sm:$0xff]
    %v484 = vld [vmem:[#allocation2 + $0x18] sm:$0xff]
    %v485 = vld [vmem:[#allocation2 + $0x20] sm:$0xff]
    %v486 = vld [vmem:[#allocation2 + $0x28] sm:$0xff]
    %v487 = vld [vmem:[#allocation2 + $0x30] sm:$0xff]
    %v488 = vld [vmem:[#allocation2 + $0x38] sm:$0xff]
    %v489 = vld [vmem:[#allocation8] sm:$0xff]
    %v490 = vld [vmem:[#allocation8 + $0x8] sm:$0xff]
    %v491 = vld [vmem:[#allocation8 + $0x10] sm:$0xff]
    %v492 = vld [vmem:[#allocation8 + $0x18] sm:$0xff]
    %v493 = vld [vmem:[#allocation8 + $0x20] sm:$0xff]
    %v494 = vld [vmem:[#allocation8 + $0x28] sm:$0xff]
    %v495 = vld [vmem:[#allocation8 + $0x30] sm:$0xff]
    %v496 = vld [vmem:[#allocation8 + $0x38] sm:$0xff]
    %v497 = vld [vmem:[#allocation8 + $0x40] sm:$0xff]
    %v498 = vld [vmem:[#allocation8 + $0x48] sm:$0xff]
    %v499 = vld [vmem:[#allocation8 + $0x50] sm:$0xff]
    %v500 = vld [vmem:[#allocation8 + $0x58] sm:$0xff]
    %v501 = vld [vmem:[#allocation8 + $0x60] sm:$0xff]
    %v502 = vld [vmem:[#allocation8 + $0x68] sm:$0xff]
    %v503 = vld [vmem:[#allocation8 + $0x70] sm:$0xff]
    %v504 = vld [vmem:[#allocation8 + $0x78] sm:$0xff]
    %v505 = vld [vmem:[%s6] sm:$0x1]
    %v507 = vperm.slane %v505, 0
    %509 = vmatpush.msra.mxu0 %v504
    %510 = vmatpush.msra.mxu0 %v503
    %511 = vmatpush.msra.mxu0 %v502
    %512 = vmatpush.msra.mxu0 %v501
    %513 = vmatpush.msra.mxu0 %v500
    %514 = vmatpush.msra.mxu0 %v499
    %515 = vmatpush.msra.mxu0 %v498
    %516 = vmatpush.msra.mxu0 %v497
    %517 = vmatpush.msra.mxu0 %v496
    %518 = vmatpush.msra.mxu0 %v495
    %519 = vmatpush.msra.mxu0 %v494
    %520 = vmatpush.msra.mxu0 %v493
    %521 = vmatpush.msra.mxu0 %v492
    %522 = vmatpush.msra.mxu0 %v491
    %523 = vmatpush.msra.mxu0 %v490
    %524 = vmatpush.msra.mxu0 %v489
    %525 = vmatmul.f32.gmra.mxu0 %v481
    %v526 = vpop.f32.mrf.mxu0
    %v527 = vadd.f32 %v507, %v526
    %528 = vmatmul.f32.gmra.mxu0 %v482
    %v529 = vpop.f32.mrf.mxu0
    %v530 = vadd.f32 %v507, %v529
    %531 = vmatmul.f32.gmra.mxu0 %v483
    %v532 = vpop.f32.mrf.mxu0
    %v533 = vadd.f32 %v507, %v532
    %534 = vmatmul.f32.gmra.mxu0 %v484
    %v535 = vpop.f32.mrf.mxu0
    %v536 = vadd.f32 %v507, %v535
    %537 = vmatmul.f32.gmra.mxu0 %v485
    %v538 = vpop.f32.mrf.mxu0
    %v539 = vadd.f32 %v507, %v538
    %540 = vmatmul.f32.gmra.mxu0 %v486
    %v541 = vpop.f32.mrf.mxu0
    %v542 = vadd.f32 %v507, %v541
    %543 = vmatmul.f32.gmra.mxu0 %v487
    %v544 = vpop.f32.mrf.mxu0
    %v545 = vadd.f32 %v507, %v544
    %546 = vmatmul.f32.gmra.mxu0 %v488
    %v547 = vpop.f32.mrf.mxu0
    %v548 = vadd.f32 %v507, %v547
    %549 = vdwg.mxu0
    %550 = vmax.xlane.f32.xlu0 %v527
    %v551 = vpop.xlane.xlu0 %550
    %552 = vmax.xlane.f32.xlu0 %v530
    %v553 = vpop.xlane.xlu0 %552
    %554 = vmax.xlane.f32.xlu0 %v533
    %v555 = vpop.xlane.xlu0 %554
    %556 = vmax.xlane.f32.xlu0 %v536
    %v557 = vpop.xlane.xlu0 %556
    %558 = vmax.xlane.f32.xlu0 %v539
    %v559 = vpop.xlane.xlu0 %558
    %560 = vmax.xlane.f32.xlu0 %v542
    %v561 = vpop.xlane.xlu0 %560
    %562 = vmax.xlane.f32.xlu0 %v545
    %v563 = vpop.xlane.xlu0 %562
    %564 = vmax.xlane.f32.xlu0 %v548
    %v565 = vpop.xlane.xlu0 %564
    %v566 = vsub.f32 %v527, %v551
    %v567 = vsub.f32 %v530, %v553
    %v568 = vsub.f32 %v533, %v555
    %v569 = vsub.f32 %v536, %v557
    %v570 = vsub.f32 %v539, %v559
    %v571 = vsub.f32 %v542, %v561
    %v572 = vsub.f32 %v545, %v563
    %v573 = vsub.f32 %v548, %v565
    %v574 = vmul.f32 %v566, 1.442695
    %v575 = vpow.pop %v574
    %v576 = vmul.f32 %v567, 1.442695
    %v577 = vpow.pop %v576
    %v578 = vmul.f32 %v568, 1.442695
    %v579 = vpow.pop %v578
    %v580 = vmul.f32 %v569, 1.442695
    %v581 = vpow.pop %v580
    %v582 = vmul.f32 %v570, 1.442695
    %v583 = vpow.pop %v582
    %v584 = vmul.f32 %v571, 1.442695
    %v585 = vpow.pop %v584
    %v586 = vmul.f32 %v572, 1.442695
    %v587 = vpow.pop %v586
    %v588 = vmul.f32 %v573, 1.442695
    %v589 = vpow.pop %v588
    %590 = vadd.xlane.f32.xlu0 %v575
    %v591 = vpop.xlane.xlu0 %590
    %592 = vadd.xlane.f32.xlu0 %v577
    %v593 = vpop.xlane.xlu0 %592
    %594 = vadd.xlane.f32.xlu0 %v579
    %v595 = vpop.xlane.xlu0 %594
    %596 = vadd.xlane.f32.xlu0 %v581
    %v597 = vpop.xlane.xlu0 %596
    %598 = vadd.xlane.f32.xlu0 %v583
    %v599 = vpop.xlane.xlu0 %598
    %600 = vadd.xlane.f32.xlu0 %v585
    %v601 = vpop.xlane.xlu0 %600
    %602 = vadd.xlane.f32.xlu0 %v587
    %v603 = vpop.xlane.xlu0 %602
    %604 = vadd.xlane.f32.xlu0 %v589
    %v605 = vpop.xlane.xlu0 %604
    %v606 = vlog2.pop %v591
    %v607 = vmul.f32 %v606, 0.6931472
    %v608 = vlog2.pop %v593
    %v609 = vmul.f32 %v608, 0.6931472
    %v610 = vlog2.pop %v595
    %v611 = vmul.f32 %v610, 0.6931472
    %v612 = vlog2.pop %v597
    %v613 = vmul.f32 %v612, 0.6931472
    %v614 = vlog2.pop %v599
    %v615 = vmul.f32 %v614, 0.6931472
    %v616 = vlog2.pop %v601
    %v617 = vmul.f32 %v616, 0.6931472
    %v618 = vlog2.pop %v603
    %v619 = vmul.f32 %v618, 0.6931472
    %v620 = vlog2.pop %v605
    %v621 = vmul.f32 %v620, 0.6931472
    %v622 = vsub.f32 %v566, %v607
    %v623 = vsub.f32 %v567, %v609
    %v624 = vsub.f32 %v568, %v611
    %v625 = vsub.f32 %v569, %v613
    %v626 = vsub.f32 %v570, %v615
    %v627 = vsub.f32 %v571, %v617
    %v628 = vsub.f32 %v572, %v619
    %v629 = vsub.f32 %v573, %v621
    %630 = vst [vmem:[%s7] sm:$0xff] %v622
    %631 = vst [vmem:[%s7 + $0x8] sm:$0xff] %v623
    %632 = vst [vmem:[%s7 + $0x10] sm:$0xff] %v624
    %633 = vst [vmem:[%s7 + $0x18] sm:$0xff] %v625
    %634 = vst [vmem:[%s7 + $0x20] sm:$0xff] %v626
    %635 = vst [vmem:[%s7 + $0x28] sm:$0xff] %v627
    %636 = vst [vmem:[%s7 + $0x30] sm:$0xff] %v628
    %637 = vst [vmem:[%s7 + $0x38] sm:$0xff] %v629
    // Predicated region
    $region46: #{rnnlm_forward.1} parent=1 // pred_check
      _
    $region47: #{rnnlm_forward.1} parent=1 // pred_check_branch
      %639 = sbr.rel (0) target = $region49
    $region48: #{rnnlm_forward.1} parent=1 // pred_region
      _
    $region49: #{rnnlm_forward.1} parent=1 // pred_fallthru
      _
    // Predicated region
    $region50: #{rnnlm_forward.1} parent=1 // pred_check
      _
    $region51: #{rnnlm_forward.1} parent=1 // pred_check_branch
      %641 = sbr.rel (0) target = $region53
    $region52: #{rnnlm_forward.1} parent=1 // pred_region
      _
    $region53: #{rnnlm_forward.1} parent=1 // pred_fallthru
      _
    %642 = vsyncpa [#allocation4], 1
    %643 = vsyncpa [#allocation6], 1
    %644 = vsyncpa [#allocation9], 1

</llo_original>
